<compile_context>
chip_gen: v5e
topology: v5e:2x2
jax: 0.10.0
libtpu: 0.0.40
codegen_flags: <defaults>
</compile_context>

<pallas_src>
import functools
import math

import jax
import jax.numpy as jnp
from jax.experimental import pallas as pl
from jax.experimental.pallas import tpu as pltpu

_MiB = 1024 * 1024


def _round_up(x, m):
    return ((x + m - 1) // m) * m


def _nt_xent_kernel(z_row_ref, z_col_ref, out_ref, m_ref, s_ref, *,
                    batch, b_pad, tm, tn, col_resident, has_padding):
    r = pl.program_id(0)
    c = pl.program_id(1)
    last_c = pl.num_programs(1) - 1
    neg_big = -1e30  # large finite negative (never -inf -> max/exp stay NaN-free)

    @pl.when(c == 0)
    def _init():
        m_ref[...] = jnp.full(m_ref.shape, neg_big, dtype=m_ref.dtype)
        s_ref[...] = jnp.zeros(s_ref.shape, dtype=s_ref.dtype)

    zr = z_row_ref[...]                                    # (tm, Cp)
    if col_resident:
        # full normalized z is resident in VMEM: slice the current chunk.
        start = pl.multiple_of(c * tn, tn)
        zc = z_col_ref[pl.ds(start, tn), :]                # (tn, Cp)
    else:
        zc = z_col_ref[...]                                # (tn, Cp) streamed

    # (1/T) * cosine-similarity tile: normalization and sqrt(1/T) were folded
    # into z in the wrapper, so a single MXU matmul (contracting the feature
    # dims of both operands, no transpose) yields the scaled similarity.
    sim = jax.lax.dot_general(
        zr, zc, dimension_numbers=(((1,), (1,)), ((), ())),
        preferred_element_type=jnp.float32)                # (tm, tn) f32

    # Diagonal (self-similarity) + zero-padded-column masks built from a
    # (tm, 1) x (1, tn) broadcast instead of two full (tm, tn) int planes.
    row_ids = r * tm + jax.lax.broadcasted_iota(jnp.int32, (tm, 1), 0)
    col_ids = c * tn + jax.lax.broadcasted_iota(jnp.int32, (1, tn), 1)
    kill = row_ids == col_ids
    if has_padding:  # static branch: only emitted when padded rows exist
        col_valid = (col_ids < batch) | ((col_ids >= b_pad) &
                                         (col_ids < b_pad + batch))
        kill = kill | jnp.logical_not(col_valid)
    sim = jnp.where(kill, neg_big, sim)

    # Flash-style streaming logsumexp over the column tiles (all math in f32).
    m_prev = m_ref[...]                                    # (tm, 1)
    m_new = jnp.maximum(m_prev, jnp.max(sim, axis=-1, keepdims=True))
    s_ref[...] = (s_ref[...] * jnp.exp(m_prev - m_new)
                  + jnp.sum(jnp.exp(sim - m_new), axis=-1, keepdims=True))
    m_ref[...] = m_new

    @pl.when(c == last_c)
    def _finalize():
        lse = m_ref[...] + jnp.log(s_ref[...])             # (tm, 1)
        if has_padding:  # zero-padded rows contribute nothing to the loss
            row_valid = (row_ids < batch) | ((row_ids >= b_pad) &
                                             (row_ids < b_pad + batch))
            lse = jnp.where(row_valid, lse, 0.0)
        # One scalar partial sum per row tile, stored lane-dense.
        out_ref[...] = jnp.broadcast_to(jnp.sum(lse), (8, 128))


def nt_xent_loss(z_i, z_j, temperature, *, tm_target=None, tn_target=256,
                 matmul_dtype=jnp.bfloat16, col_resident=None):
    """SimCLR NT-Xent loss matching NT_Xent.forward (CrossEntropy sum / N)."""
    assert z_i.shape == z_j.shape and z_i.ndim == 2
    b, feat = z_i.shape
    n = 2 * b
    itemsize = jnp.dtype(matmul_dtype).itemsize

    # ---- per-generation VMEM budget (64 MiB/TC on v7x, 128 MiB on v5e/v6e).
    try:
        vmem_cap = int(getattr(pltpu.get_tpu_info(), "vmem_capacity_bytes",
                               64 * _MiB))
    except Exception:
        vmem_cap = 64 * _MiB                      # conservative fallback
    vmem_limit = max(32 * _MiB, vmem_cap - 24 * _MiB)  # keep compiler headroom

    # ---- lane/sublane-friendly padding and tile selection.
    c_pad = _round_up(max(feat, 1), 128)
    if tm_target is None:
        # If z cannot stay VMEM-resident, use a taller row tile: re-streamed
        # column HBM traffic scales ~1/tm (matters most on v7x's 64 MiB VMEM).
        z_guess = 2 * (2 * _round_up(max(b, 1), 256)) * c_pad * itemsize
        tm_target = 256 if z_guess + 4 * _MiB <= vmem_limit else 512
    tm = min(_round_up(tm_target, 8), _round_up(b, 8))
    b_pad = _round_up(b, tm)
    n_pad = 2 * b_pad
    tn_t = _round_up(tn_target, 128) if tn_target >= 128 else _round_up(tn_target, 8)
    tn = math.gcd(min(tn_t, n_pad), n_pad)        # multiple of 8, divides n_pad
    n_row_tiles = n_pad // tm
    n_col_tiles = n_pad // tn

    # ---- normalize + fold temperature ONCE (cheap O(N*C) XLA, not per tile).
    scale = jnp.sqrt(jnp.float32(1.0 / temperature))

    def _norm(z):
        z = z.astype(jnp.float32)
        nrm = jnp.sqrt(jnp.sum(z * z, axis=-1, keepdims=True))
        return (z / jnp.maximum(nrm, 1e-8)) * scale

    zs_i = _norm(z_i)
    zs_j = _norm(z_j)

    # Positive term in the wrapper: sum_i (sim[i, B+i] + sim[B+i, i]) in f32.
    pos_sum = 2.0 * jnp.sum(zs_i * zs_j)

    # Padded, pre-normalized (default bf16) z in HBM: z_i rows [0, b),
    # z_j rows [b_pad, b_pad + b); padded rows/features stay zero.
    z = jnp.zeros((n_pad, c_pad), matmul_dtype)
    z = z.at[:b, :feat].set(zs_i.astype(matmul_dtype))
    z = z.at[b_pad:b_pad + b, :feat].set(zs_j.astype(matmul_dtype))

    # ---- keep the whole z VMEM-resident across the column loop when it fits.
    z_bytes = n_pad * c_pad * itemsize
    row_bytes = tm * c_pad * itemsize
    work_bytes = 4 * tm * tn * 4 + 2 * tm * 4 + 2 * 8 * 128 * 4 + 2 * _MiB
    resident_bytes = 2 * z_bytes + 2 * row_bytes + work_bytes  # 2x: dbl-buffer
    if col_resident is None:
        col_resident = resident_bytes <= vmem_limit

    if col_resident:
        col_spec = pl.BlockSpec((n_pad, c_pad), lambda r, c: (0, 0))
    else:
        col_spec = pl.BlockSpec((tn, c_pad), lambda r, c: (c, 0))

    kernel = functools.partial(
        _nt_xent_kernel, batch=b, b_pad=b_pad, tm=tm, tn=tn,
        col_resident=col_resident, has_padding=(b_pad != b))

    # TODO(synk): profile-gated bf16 exp on the EUP (v6e/v7x only) once the bf16
    # matmul makes the single EUP the binding VLIW slot.
    partial_sums = pl.pallas_call(
        kernel,
        out_shape=jax.ShapeDtypeStruct((8 * n_row_tiles, 128), jnp.float32),
        grid=(n_row_tiles, n_col_tiles),
        in_specs=[pl.BlockSpec((tm, c_pad), lambda r, c: (r, 0)), col_spec],
        out_specs=pl.BlockSpec((8, 128), lambda r, c: (r, 0)),
        scratch_shapes=[pltpu.VMEM((tm, 1), jnp.float32),   # running max
                        pltpu.VMEM((tm, 1), jnp.float32)],  # running sum-exp
        compiler_params=pltpu.CompilerParams(
            dimension_semantics=("parallel", "arbitrary"),
            vmem_limit_bytes=int(vmem_limit)),
    )(z, z)

    # Tiny O(n_row_tiles) finish in XLA.
    lse_sum = jnp.sum(partial_sums[0::8, 0])
    return (lse_sum - pos_sum) / n


def _nt_xent_reference(z_i, z_j, temperature):
    """Pure-JAX reference mirroring the PyTorch module (correctness check)."""
    batch_size = z_i.shape[0]
    n = 2 * batch_size
    z = jnp.concatenate([z_i, z_j], axis=0).astype(jnp.float32)
    zn = z / jnp.maximum(jnp.linalg.norm(z, axis=-1, keepdims=True), 1e-8)
    sim = jnp.matmul(zn, zn.T, precision=jax.lax.Precision.HIGHEST) / temperature
    idx = jnp.arange(n)
    pos = sim[idx, (idx + batch_size) % n]
    sim_masked = jnp.where(jnp.eye(n, dtype=bool), -jnp.inf, sim)
    lse = jax.scipy.special.logsumexp(sim_masked, axis=-1)
    return jnp.sum(lse - pos) / n


if __name__ == "__main__":
    key = jax.random.PRNGKey(0)
    k1, k2, k3, k4, k5, k6 = jax.random.split(key, 6)
    temperature = 0.5

    def check(name, loss, ref, atol, rtol):
        loss = jax.block_until_ready(loss)
        ref = jax.block_until_ready(ref)
        assert jnp.isfinite(loss), f"{name}: non-finite loss {loss}"
        assert jnp.allclose(loss, ref, atol=atol, rtol=rtol), (name, loss, ref)

    # 1) aligned batch, default path (bf16 matmul, VMEM-resident z).
    z_i = jax.random.normal(k1, (8, 32), dtype=jnp.float32)
    z_j = jax.random.normal(k2, (8, 32), dtype=jnp.float32)
    check("bf16/resident", nt_xent_loss(z_i, z_j, temperature),
          _nt_xent_reference(z_i, z_j, temperature), atol=3e-2, rtol=3e-2)

    # 2) ragged batch (exercises the padded-row / padded-column masks).
    z_i2 = jax.random.normal(k3, (5, 48), dtype=jnp.float32)
    z_j2 = jax.random.normal(k4, (5, 48), dtype=jnp.float32)
    check("bf16/ragged", nt_xent_loss(z_i2, z_j2, temperature),
          _nt_xent_reference(z_i2, z_j2, temperature), atol=3e-2, rtol=3e-2)

    # 3) f32 matmul, streamed column tiles, multi-step flash recurrence.
    z_i3 = jax.random.normal(k5, (24, 32), dtype=jnp.float32)
    z_j3 = jax.random.normal(k6, (24, 32), dtype=jnp.float32)
    ref3 = _nt_xent_reference(z_i3, z_j3, temperature)
    check("f32/streaming",
          nt_xent_loss(z_i3, z_j3, temperature, matmul_dtype=jnp.float32,
                       tm_target=8, tn_target=16, col_resident=False),
          ref3, atol=1e-3, rtol=1e-3)

    # 4) f32 matmul, VMEM-resident z with in-kernel column chunking.
    check("f32/resident",
          nt_xent_loss(z_i3, z_j3, temperature, matmul_dtype=jnp.float32,
                       tm_target=8, tn_target=16, col_resident=True),
          ref3, atol=1e-3, rtol=1e-3)

    print("KERNEL_OK")
</pallas_src>

<mosaic_0001>
module attributes {stable_mosaic.version = 11 : i64} {
  func.func @_nt_xent_kernel(%arg0: i32, %arg1: i32, %arg2: memref<8x128xbf16, #tpu.memory_space<vmem>>, %arg3: memref<16x128xbf16, #tpu.memory_space<vmem>>, %arg4: memref<8x128xf32, #tpu.memory_space<vmem>>, %arg5: memref<8x1xf32, #tpu.memory_space<vmem>>, %arg6: memref<8x1xf32, #tpu.memory_space<vmem>>) attributes {dimension_semantics = [#tpu.dimension_semantics<parallel>, #tpu.dimension_semantics<arbitrary>], iteration_bounds = array<i64: 2, 1>, scalar_prefetch = 0 : i64, scratch_operands = 2 : i64, tpu.core_type = #tpu.core_type<tc>, window_params = [{transform_indices = @transform_0, window_bounds = array<i64: 8, 128>}, {pipeline_mode = #tpu.pipeline_mode<synchronous>, transform_indices = @transform_1, window_bounds = array<i64: 16, 128>}, {transform_indices = @transform_2, window_bounds = array<i64: 8, 128>}]} {
    %c0_i32 = arith.constant 0 : i32
    %0 = arith.cmpi eq, %arg1, %c0_i32 : i32
    %1 = arith.extui %0 : i1 to i32
    %c0_i32_0 = arith.constant 0 : i32
    %2 = arith.cmpi ne, %1, %c0_i32_0 : i32
    scf.if %2 {
      %cst_17 = arith.constant -1.000000e+30 : f32
      %41 = vector.broadcast %cst_17 : f32 to vector<8x1xf32>
      %c0_18 = arith.constant 0 : index
      %c0_19 = arith.constant 0 : index
      %42 = vector.load %arg5[%c0_18, %c0_19] : memref<8x1xf32, #tpu.memory_space<vmem>>, vector<8x1xf32>
      tpu.vector_store %arg5[%c0_18, %c0_19], %41 {strides = array<i32>} : memref<8x1xf32, #tpu.memory_space<vmem>>, vector<8x1xf32>,
      %cst_20 = arith.constant 0.000000e+00 : f32
      %43 = vector.broadcast %cst_20 : f32 to vector<8x1xf32>
      %c0_21 = arith.constant 0 : index
      %c0_22 = arith.constant 0 : index
      %44 = vector.load %arg6[%c0_21, %c0_22] : memref<8x1xf32, #tpu.memory_space<vmem>>, vector<8x1xf32>
      tpu.vector_store %arg6[%c0_21, %c0_22], %43 {strides = array<i32>} : memref<8x1xf32, #tpu.memory_space<vmem>>, vector<8x1xf32>,
    } else {
    }
    %c0 = arith.constant 0 : index
    %c0_1 = arith.constant 0 : index
    %3 = vector.load %arg2[%c0, %c0_1] : memref<8x128xbf16, #tpu.memory_space<vmem>>, vector<8x128xbf16>
    %c16_i32 = arith.constant 16 : i32
    %4 = arith.muli %arg1, %c16_i32 : i32
    %5 = tpu.assume_multiple %4, 16 : i32
    %6 = arith.index_cast %5 : i32 to index
    %c0_2 = arith.constant 0 : index
    %7 = vector.load %arg3[%6, %c0_2] : memref<16x128xbf16, #tpu.memory_space<vmem>>, vector<16x128xbf16>
    %cst = arith.constant dense<0.000000e+00> : vector<8x16xf32>
    %8 = tpu.matmul %3, %7, %cst {dimension_numbers = #tpu.dot_dimension_numbers<[1], [1], [0], [0], [0, 0, 1, 0], [], []>} : vector<8x128xbf16>, vector<16x128xbf16>, vector<8x16xf32> -> vector<8x16xf32>
    %c8_i32 = arith.constant 8 : i32
    %9 = arith.muli %arg0, %c8_i32 : i32
    %10 = tpu.iota {dimensions = array<i32: 0>} : vector<8x1xi32>
    %11 = vector.broadcast %9 : i32 to vector<8x1xi32>
    %12 = arith.addi %11, %10 : vector<8x1xi32>
    %c16_i32_3 = arith.constant 16 : i32
    %13 = arith.muli %arg1, %c16_i32_3 : i32
    %14 = tpu.iota {dimensions = array<i32: 1>} : vector<1x16xi32>
    %15 = vector.broadcast %13 : i32 to vector<1x16xi32>
    %16 = arith.addi %15, %14 : vector<1x16xi32>
    %17 = vector.broadcast %12 : vector<8x1xi32> to vector<8x16xi32>
    %18 = vector.broadcast %16 : vector<1x16xi32> to vector<8x16xi32>
    %19 = arith.cmpi eq, %17, %18 : vector<8x16xi32>
    %cst_4 = arith.constant -1.000000e+30 : f32
    %20 = vector.broadcast %cst_4 : f32 to vector<8x16xf32>
    %21 = arith.select %19, %20, %8 : vector<8x16xi1>, vector<8x16xf32>
    %c0_5 = arith.constant 0 : index
    %c0_6 = arith.constant 0 : index
    %22 = vector.load %arg5[%c0_5, %c0_6] : memref<8x1xf32, #tpu.memory_space<vmem>>, vector<8x1xf32>
    %cst_7 = arith.constant dense<0xFF800000> : vector<8xf32>
    %23 = vector.multi_reduction <maximumf>, %21, %cst_7 [1] : vector<8x16xf32> to vector<8xf32>
    %24 = vector.shape_cast %23 : vector<8xf32> to vector<8x1xf32>
    %25 = arith.maximumf %22, %24 : vector<8x1xf32>
    %c0_8 = arith.constant 0 : index
    %c0_9 = arith.constant 0 : index
    %26 = vector.load %arg6[%c0_8, %c0_9] : memref<8x1xf32, #tpu.memory_space<vmem>>, vector<8x1xf32>
    %27 = arith.subf %22, %25 : vector<8x1xf32>
    %28 = math.exp %27 : vector<8x1xf32>
    %29 = arith.mulf %26, %28 : vector<8x1xf32>
    %30 = vector.broadcast %25 : vector<8x1xf32> to vector<8x16xf32>
    %31 = arith.subf %21, %30 : vector<8x16xf32>
    %32 = math.exp %31 : vector<8x16xf32>
    %cst_10 = arith.constant dense<0.000000e+00> : vector<8xf32>
    %33 = vector.multi_reduction <add>, %32, %cst_10 [1] : vector<8x16xf32> to vector<8xf32>
    %34 = vector.shape_cast %33 : vector<8xf32> to vector<8x1xf32>
    %35 = arith.addf %29, %34 : vector<8x1xf32>
    %c0_11 = arith.constant 0 : index
    %c0_12 = arith.constant 0 : index
    %36 = vector.load %arg6[%c0_11, %c0_12] : memref<8x1xf32, #tpu.memory_space<vmem>>, vector<8x1xf32>
    tpu.vector_store %arg6[%c0_11, %c0_12], %35 {strides = array<i32>} : memref<8x1xf32, #tpu.memory_space<vmem>>, vector<8x1xf32>,
    %c0_13 = arith.constant 0 : index
    %c0_14 = arith.constant 0 : index
    %37 = vector.load %arg5[%c0_13, %c0_14] : memref<8x1xf32, #tpu.memory_space<vmem>>, vector<8x1xf32>
    tpu.vector_store %arg5[%c0_13, %c0_14], %25 {strides = array<i32>} : memref<8x1xf32, #tpu.memory_space<vmem>>, vector<8x1xf32>,
    %c0_i32_15 = arith.constant 0 : i32
    %38 = arith.cmpi eq, %arg1, %c0_i32_15 : i32
    %39 = arith.extui %38 : i1 to i32
    %c0_i32_16 = arith.constant 0 : i32
    %40 = arith.cmpi ne, %39, %c0_i32_16 : i32
    scf.if %40 {
      %c0_17 = arith.constant 0 : index
      %c0_18 = arith.constant 0 : index
      %41 = vector.load %arg5[%c0_17, %c0_18] : memref<8x1xf32, #tpu.memory_space<vmem>>, vector<8x1xf32>
      %c0_19 = arith.constant 0 : index
      %c0_20 = arith.constant 0 : index
      %42 = vector.load %arg6[%c0_19, %c0_20] : memref<8x1xf32, #tpu.memory_space<vmem>>, vector<8x1xf32>
      %43 = math.log %42 : vector<8x1xf32>
      %44 = arith.addf %41, %43 : vector<8x1xf32>
      %45 = vector.shape_cast %44 : vector<8x1xf32> to vector<1x8x1xf32>
      %cst_21 = arith.constant dense<0.000000e+00> : vector<1xf32>
      %46 = vector.multi_reduction <add>, %45, %cst_21 [1, 2] : vector<1x8x1xf32> to vector<1xf32>
      %47 = vector.shape_cast %46 : vector<1xf32> to vector<1x1x1xf32>
      %48 = vector.extract %47[0, 0, 0] : f32 from vector<1x1x1xf32>
      %49 = vector.broadcast %48 : f32 to vector<8x128xf32>
      %c0_22 = arith.constant 0 : index
      %c0_23 = arith.constant 0 : index
      %50 = vector.load %arg4[%c0_22, %c0_23] : memref<8x128xf32, #tpu.memory_space<vmem>>, vector<8x128xf32>
      tpu.vector_store %arg4[%c0_22, %c0_23], %49 {strides = array<i32>} : memref<8x128xf32, #tpu.memory_space<vmem>>, vector<8x128xf32>,
    } else {
    }
    return
  }
  func.func @transform_0(%arg0: i32, %arg1: i32) -> (i32, i32) {
    %c0_i32 = arith.constant 0 : i32
    %c0_i32_0 = arith.constant 0 : i32
    return %arg0, %c0_i32 : i32, i32
  }
  func.func @transform_1(%arg0: i32, %arg1: i32) -> (i32, i32) {
    %c0_i32 = arith.constant 0 : i32
    %c0_i32_0 = arith.constant 0 : i32
    %c0_i32_1 = arith.constant 0 : i32
    return %c0_i32, %c0_i32_0 : i32, i32
  }
  func.func @transform_2(%arg0: i32, %arg1: i32) -> (i32, i32) {
    %c0_i32 = arith.constant 0 : i32
    %c0_i32_0 = arith.constant 0 : i32
    return %arg0, %c0_i32 : i32, i32
  }
}

</mosaic_0001>

<llo_original>
// kernel: tpu_custom_call.1
$region0: #{tpu_custom_call.1}
  #allocation0 [shape = 'u32[]', space=smem, size = 0x4, offset = 0x4, fixed_abs, tag = 'smem constant byte address 0x4 - core index']
  #allocation1 [shape = 'u32[72,128]{1,0:T(1,128)}', space=vmem, size = 0x9000, scoped, tag = 'internal scratch']
  #allocation2 [shape = 'f32[8,1]{1,0:T(8,128)}', space=vmem, size = 0x1000, scoped, tag = 'scratch operand']
  #allocation3 [shape = 'f32[8,1]{1,0:T(8,128)}', space=vmem, size = 0x1000, scoped, tag = 'scratch operand']
  %s0 = inlined_call_operand.hbm [shape: bf16[16,128], index: 0, kind: input, shape index: {}]
  %s1 = inlined_call_operand.hbm [shape: bf16[16,128], index: 1, kind: input, shape index: {}]
  %s2 = inlined_call_operand.hbm [shape: f32[16,128], index: 2, kind: output, shape index: {}]
  %s3 = sld [smem:[#allocation0]]
  $region57: #{tpu_custom_call.1} parent=0
    _
  %s5 = ssub.s32 1, %s3
  %s6 = scalar_select 0, %s5, %s3
  $region1: #{tpu_custom_call.1} parent=0
    #allocation4 [shape = 'u8[4096]{0}', space=vmem, size = 0x1000, scoped, tag = 'input window, operand 0']
    #allocation5 [shape = 's32[2]{0}', space=sflag, size = 0x8, scoped, tag = 'scoped memory for tpu_custom_call.1']
    #allocation6 [shape = 's32[2]{0}', space=sflag, size = 0x8, scoped, tag = 'scoped memory for tpu_custom_call.1']
    #allocation7 [shape = 'u8[4096]{0}', space=vmem, size = 0x1000, scoped, tag = 'input window, operand 1, single buffered']
    #allocation8 [shape = 's32[1]{0}', space=sflag, size = 0x4, scoped, tag = 'scoped memory for tpu_custom_call.1']
    #allocation9 [shape = 'u8[8192]{0}', space=vmem, size = 0x2000, scoped, tag = 'output window, operand 0']
    %7 = vsyncpa [#allocation5], 0
    %s8 = scalar_lea.sflag [#allocation5], 1
    %9 = vsyncpa %s8, 0
    %10 = vsyncpa [#allocation8], 0
    %11 = vsyncpa [#allocation6], 0
    %s12 = scalar_lea.sflag [#allocation6], 1
    %13 = vsyncpa %s12, 0
    loop: start=0, step=1, limit=4
    $region2: #{tpu_custom_call.1} parent=1 // loop_pre_header
      _
    $region3: #{tpu_custom_call.1} parent=1 // loop_header
      %s15 = sphi 0, %s19
      %p16 = scmp.ge.s32.totalorder %s15, 4
      %s22 = sphi 0, %s34
      %s23 = sphi 0, %s30
      %s24 = sphi 0, %s22
      %s25 = sphi 0, %s23
      %s26 = sphi 0, %s24
      %s27 = sphi 0, %s25
      %s37 = sphi 0, %s39
      %s40 = sphi 0, %s37
      %s41 = sphi 0, %s40
      %s57 = sphi 0, %s41
      %s61 = sphi 0, %s61
      %s63 = sphi 0, %s61
      %s64 = sphi 0, %s63
      %s78 = sphi 0, %s64
      %s84 = sphi 0, %s86
      %s87 = sphi 0, %s84
      %s88 = sphi 0, %s87
      %s104 = sphi 0, %s88
    $region4: #{tpu_custom_call.1} parent=1 // loop_header_branch
      %18 = sbr.rel (%p16) target = $region8
    $region5: #{tpu_custom_call.1} parent=1 // loop_body
      %s20 = ssub.s32 %s15, 1
      %s21 = ssub.s32 %s15, 2
      %s28 = sadd.s32 1, %s23
      %p29 = scmp.ge.s32.totalorder %s28, 1
      %s30 = scalar_select %p29, 0, %s28
      %s31 = sadd.s32 1, %s22
      %s32 = scalar_select %p29, %s31, %s22
      %p33 = scmp.ge.s32.totalorder %s32, 2
      %s34 = scalar_select %p33, 0, %s32
      %s35 = ssub.s32 %s22, %s34
      %p36 = scmp.eq.s32.totalorder %s35, 0
      %s38 = sadd.s32 %s37, 1
      %s39 = scalar_select %p36, %s37, %s38
      %p42 = pneg %p36
      %p43 = scmp.eq.s32.totalorder %s15, 1
      %p44 = por %p42, %p43
      %p45 = scmp.ne.s32.totalorder %s37, %s40
      %p46 = scmp.eq.s32.totalorder %s15, 0
      %p47 = por %p45, %p46
      %p48 = scmp.ne.s32.totalorder %s37, %s40
      %p49 = scmp.eq.s32.totalorder %s20, 1
      %p50 = por %p48, %p49
      %p51 = scmp.ne.s32.totalorder %s40, %s41
      %p52 = scmp.eq.s32.totalorder %s20, 0
      %p53 = por %p51, %p52
      %p54 = scmp.ne.s32.totalorder %s40, %s41
      %p55 = scmp.eq.s32.totalorder %s21, 1
      %p56 = por %p54, %p55
      %p58 = scmp.ne.s32.totalorder %s41, %s57
      %p59 = scmp.eq.s32.totalorder %s21, 0
      %p60 = por %p58, %p59
      %s62 = sadd.s32 %s61, 1
      %p65 = scmp.eq.s32.totalorder %s15, 1
      %p66 = scmp.ne.s32.totalorder %s61, %s63
      %p67 = scmp.eq.s32.totalorder %s15, 0
      %p68 = por %p66, %p67
      %p69 = scmp.ne.s32.totalorder %s61, %s63
      %p70 = scmp.eq.s32.totalorder %s20, 1
      %p71 = por %p69, %p70
      %p72 = scmp.ne.s32.totalorder %s63, %s64
      %p73 = scmp.eq.s32.totalorder %s20, 0
      %p74 = por %p72, %p73
      %p75 = scmp.ne.s32.totalorder %s63, %s64
      %p76 = scmp.eq.s32.totalorder %s21, 1
      %p77 = por %p75, %p76
      %p79 = scmp.ne.s32.totalorder %s64, %s78
      %p80 = scmp.eq.s32.totalorder %s21, 0
      %p81 = por %p79, %p80
      %s82 = ssub.s32 %s22, %s34
      %p83 = scmp.eq.s32.totalorder %s82, 0
      %s85 = sadd.s32 %s84, 1
      %s86 = scalar_select %p83, %s84, %s85
      %p89 = pneg %p83
      %p90 = scmp.eq.s32.totalorder %s15, 1
      %p91 = por %p89, %p90
      %p92 = scmp.ne.s32.totalorder %s84, %s87
      %p93 = scmp.eq.s32.totalorder %s15, 0
      %p94 = por %p92, %p93
      %p95 = scmp.ne.s32.totalorder %s84, %s87
      %p96 = scmp.eq.s32.totalorder %s20, 1
      %p97 = por %p95, %p96
      %p98 = scmp.ne.s32.totalorder %s87, %s88
      %p99 = scmp.eq.s32.totalorder %s20, 0
      %p100 = por %p98, %p99
      %p101 = scmp.ne.s32.totalorder %s87, %s88
      %p102 = scmp.eq.s32.totalorder %s21, 1
      %p103 = por %p101, %p102
      %p105 = scmp.ne.s32.totalorder %s88, %s104
      %p106 = scmp.eq.s32.totalorder %s21, 0
      %p107 = por %p105, %p106
      %p108 = scmp.le.s32.totalorder 1, %s15
      %p109 = scmp.lt.s32.totalorder %s15, 3
      %p110 = pnand %p108, %p109
      %p111 = pneg %p110
      // Predicated region
      $region9: #{tpu_custom_call.1} parent=5 // pred_check
        _
      $region10: #{tpu_custom_call.1} parent=5 // pred_check_branch
        %113 = sbr.rel (%p110) target = $region12
      $region11: #{tpu_custom_call.1} parent=5 // pred_region
        %s114 = ssub.s32 %s15, 1
        // Predicated region
        $region13: #{tpu_custom_call.1} parent=11 // pred_check
          %p115 = pneg %p74
        $region14: #{tpu_custom_call.1} parent=11 // pred_check_branch
          %117 = sbr.rel (%p115) target = $region16
        $region15: #{tpu_custom_call.1} parent=11 // pred_region
          %119 = vsyncadd [#allocation8], 0
          %s120 = sshll.u32 %s1, 4
          %s121 = int_to_ptr.hbm [resolvable:$true] %s120
          %s122 = sshll.u32 [#allocation7], 4
          %s123 = int_to_ptr.vmem [resolvable:$true] %s122
          %128 = dma.hbm_to_vmem [thread:$0]  %s121, 128, %s123, [#allocation8], 64, 64, 4
        $region16: #{tpu_custom_call.1} parent=11 // pred_fallthru
          _
      $region12: #{tpu_custom_call.1} parent=5 // pred_fallthru
        _
      %p129 = scmp.lt.s32.totalorder %s15, 2
      // Predicated region
      $region17: #{tpu_custom_call.1} parent=5 // pred_check
        %p130 = pneg %p129
      $region18: #{tpu_custom_call.1} parent=5 // pred_check_branch
        %132 = sbr.rel (%p130) target = $region20
      $region19: #{tpu_custom_call.1} parent=5 // pred_region
        // Predicated region
        $region21: #{tpu_custom_call.1} parent=19 // pred_check
          %p133 = pneg %p47
        $region22: #{tpu_custom_call.1} parent=19 // pred_check_branch
          %135 = sbr.rel (%p133) target = $region24
        $region23: #{tpu_custom_call.1} parent=19 // pred_region
          %s136 = sand.u32 %s37, 1
          %s137 = scalar_lea.sflag [#allocation5], %s136
          %s138 = sand.u32 %s37, 1
          %s139 = smul.addr %s138, 4
          %s140 = scalar_lea.vmem [#allocation4], %s139
          %142 = vsyncadd %s137, 0
          %s143 = smul.addr %s22, 4
          %s144 = scalar_lea.hbm %s0, %s143
          %s146 = sshll.u32 %s144, 4
          %s147 = int_to_ptr.hbm [resolvable:$true] %s146
          %s148 = sshll.u32 %s140, 4
          %s149 = int_to_ptr.vmem [resolvable:$true] %s148
          %151 = dma.hbm_to_vmem [thread:$0]  %s147, 64, %s149, %s137
        $region24: #{tpu_custom_call.1} parent=19 // pred_fallthru
          _
      $region20: #{tpu_custom_call.1} parent=5 // pred_fallthru
        _
      %p152 = scmp.le.s32.totalorder 1, %s15
      %p153 = scmp.lt.s32.totalorder %s15, 3
      %p154 = pnand %p152, %p153
      %p155 = pneg %p154
      // Predicated region
      $region25: #{tpu_custom_call.1} parent=5 // pred_check
        _
      $region26: #{tpu_custom_call.1} parent=5 // pred_check_branch
        %157 = sbr.rel (%p154) target = $region28
      $region27: #{tpu_custom_call.1} parent=5 // pred_region
        %s158 = ssub.s32 %s15, 1
        %s159 = sand.u32 %s40, 1
        %s160 = scalar_lea.sflag [#allocation5], %s159
        %s161 = sand.u32 %s40, 1
        %s162 = smul.addr %s161, 4
        %s163 = scalar_lea.vmem [#allocation4], %s162
        // Predicated region
        $region29: #{tpu_custom_call.1} parent=27 // pred_check
          %p164 = pneg %p53
        $region30: #{tpu_custom_call.1} parent=27 // pred_check_branch
          %166 = sbr.rel (%p164) target = $region32
        $region31: #{tpu_custom_call.1} parent=27 // pred_region
          %168 = dma.done %s160, 64
        $region32: #{tpu_custom_call.1} parent=27 // pred_fallthru
          _
        // Predicated region
        $region33: #{tpu_custom_call.1} parent=27 // pred_check
          %p169 = pneg %p74
        $region34: #{tpu_custom_call.1} parent=27 // pred_check_branch
          %171 = sbr.rel (%p169) target = $region36
        $region35: #{tpu_custom_call.1} parent=27 // pred_region
          %173 = dma.done [#allocation8], 128
        $region36: #{tpu_custom_call.1} parent=27 // pred_fallthru
          _
        %s174 = sand.u32 %s40, 1
        %s175 = scalar_lea.sflag [#allocation5], %s174
        %s176 = sand.u32 %s40, 1
        %s177 = smul.addr %s176, 4
        %s178 = scalar_lea.vmem [#allocation4], %s177
        %p179 = pneg %p53
        %p180 = pneg %p50
        %p181 = pneg %p74
        %p182 = pneg %p71
        %p183 = pneg %p100
        %p184 = pneg %p97
        %s185 = sand.u32 %s87, 1
        %s186 = scalar_lea.sflag [#allocation6], %s185
        %s187 = sand.u32 %s87, 1
        %s188 = smul.addr %s187, 8
        %s189 = scalar_lea.vmem [#allocation9], %s188
        %p191 = scmp.eq.s32.totalorder %s25, 0
        // Predicated region
        $region37: #{tpu_custom_call.1} parent=27 // pred_check
          %p192 = pneg %p191
        $region38: #{tpu_custom_call.1} parent=27 // pred_check_branch
          %194 = sbr.rel (%p192) target = $region40
        $region39: #{tpu_custom_call.1} parent=27 // pred_region
          %vm195 = vcmask 7168
          %196 = vst.msk [vmem:[#allocation2] sm:$0xff] %vm195, -1e+30
          %197 = vst.msk [vmem:[#allocation3] sm:$0xff] %vm195, 0.0
        $region40: #{tpu_custom_call.1} parent=27 // pred_fallthru
          _
        %v198 = vld [vmem:[%s163] sm:$0xf]
        %s199 = smul.u32 %s25, 16
        %s200 = sshra.s32 %s199, 3
        %s201 = sand.u32 %s199, 7
        %s202 = smul.addr %s200, 4
        %s203 = scalar_lea.vmem [#allocation7], %s202
        %v204 = vld [vmem:[%s203] sm:$0xf]
        %v205 = vld [vmem:[%s203 + $0x4] sm:$0xf]
        %v208 = vunpack.c.l.b16 %v204
        %v209 = vunpack.c.l.b16 %v205
        %v210 = vpack.c.b16 %v209, %v208
        %212 = vmatpush.bf16.xpose.msra.mxu0 0
        %213 = vmatpush.bf16.xpose.msra.mxu0 0
        %214 = vmatpush.bf16.xpose.msra.mxu0 0
        %215 = vmatpush.bf16.xpose.msra.mxu0 0
        %216 = vmatpush.bf16.xpose.msra.mxu0 0
        %217 = vmatpush.bf16.xpose.msra.mxu0 0
        %218 = vmatpush.bf16.xpose.msra.mxu0 0
        %219 = vmatpush.bf16.xpose.msra.mxu0 %v210
        %220 = vmatmul.bf16.gmra.mxu0 %v198
        %v221 = vpop.f32.mrf.mxu0
        %v222 = vadd.f32 0.0, %v221
        %v223 = vpop.f32.mrf.mxu0
        %224 = vdwg.mxu0
        %s225 = smul.u32 %s24, 8
        %v226 = vlaneseq
        %v227 = vshrl.u32 %v226, 7
        %v228 = vstv %s225
        %v229 = vadd.s32 %v228, %v227
        %v230 = vlaneseq
        %v231 = vand.u32 %v230, 127
        %v232 = vstv %s199
        %v233 = vadd.s32 %v232, %v231
        %vm234 = vcmp.eq.s32.totalorder %v229, %v233
        %v235 = vsel %vm234, -1e+30, %v222
        %v236 = vld [vmem:[#allocation2] sm:$0xff]
        %vm237 = vcmask 130048
        %v238 = vsel %vm237, %v235, -inf
        %239 = vmax.xlane.f32.xlu0 %v238
        %v240 = vpop.xlane.xlu0 %239
        %v241 = vmax.f32 %v236, %v240
        %v242 = vld [vmem:[#allocation3] sm:$0xff]
        %v243 = vsub.f32 %v236, %v241
        %v244 = vmul.f32 %v243, 1.442695
        %v245 = vpow.pop %v244
        %v246 = vmul.f32 %v242, %v245
        %248 = vset.pattern.permute.xlu0 0
        %249 = vperm.xlu0 %248, %v241
        %v250 = vpop.permute.xlu0 %249
        %v252 = vsub.f32 %v235, %v250
        %v253 = vmul.f32 %v252, 1.442695
        %v254 = vpow.pop %v253
        %v255 = vsel %vm237, %v254, 0.0
        %256 = vadd.xlane.f32.xlu0 %v255
        %v257 = vpop.xlane.xlu0 %256
        %v258 = vadd.f32 %v246, %v257
        %vm259 = vcmask 7168
        %260 = vst.msk [vmem:[#allocation3] sm:$0xff] %vm259, %v258
        %261 = vst.msk [vmem:[#allocation2] sm:$0xff] %vm259, %v241
        // Predicated region
        $region41: #{tpu_custom_call.1} parent=27 // pred_check
          %p262 = pneg %p191
        $region42: #{tpu_custom_call.1} parent=27 // pred_check_branch
          %264 = sbr.rel (%p262) target = $region44
        $region43: #{tpu_custom_call.1} parent=27 // pred_region
          %v265 = vld [vmem:[#allocation2] sm:$0xff]
          %v266 = vld [vmem:[#allocation3] sm:$0xff]
          %v267 = vlog2.pop %v266
          %v268 = vmul.f32 %v267, 0.6931472
          %v269 = vadd.f32 %v265, %v268
          %v270 = vsel %vm259, %v269, 0.0
          %271 = vadd.xlane.f32.xlu0 %v270
          %v272 = vpop.xlane.xlu0 %271
          %v273 = vrot.slane %v272, 4
          %v274 = vadd.f32 %v272, %v273
          %v275 = vrot.slane %v274, 2
          %v276 = vadd.f32 %v274, %v275
          %v277 = vrot.slane %v276, 1
          %v278 = vadd.f32 %v276, %v277
          %s279 = vtos %v278
          %v280 = vstv %s279
          %281 = vst [vmem:[%s189] sm:$0xff] %v280
        $region44: #{tpu_custom_call.1} parent=27 // pred_fallthru
          _
        %s282 = sand.u32 %s87, 1
        %s283 = scalar_lea.sflag [#allocation6], %s282
        %s284 = sand.u32 %s87, 1
        %s285 = smul.addr %s284, 8
        %s286 = scalar_lea.vmem [#allocation9], %s285
        // Predicated region
        $region45: #{tpu_custom_call.1} parent=27 // pred_check
          %p287 = pneg %p97
        $region46: #{tpu_custom_call.1} parent=27 // pred_check_branch
          %289 = sbr.rel (%p287) target = $region48
        $region47: #{tpu_custom_call.1} parent=27 // pred_region
          %291 = vsyncadd %s283, 0
          %s292 = smul.addr %s24, 8
          %s293 = scalar_lea.hbm %s2, %s292
          %s295 = sshll.u32 %s286, 4
          %s296 = int_to_ptr.vmem [resolvable:$true] %s295
          %s297 = sshll.u32 %s293, 4
          %s298 = int_to_ptr.hbm [resolvable:$true] %s297
          %300 = dma.vmem_to_hbm [thread:$0]  %s296, 128, %s298, %s283
        $region48: #{tpu_custom_call.1} parent=27 // pred_fallthru
          _
      $region28: #{tpu_custom_call.1} parent=5 // pred_fallthru
        _
      %p301 = scmp.le.s32.totalorder 2, %s15
      // Predicated region
      $region49: #{tpu_custom_call.1} parent=5 // pred_check
        %p302 = pneg %p301
      $region50: #{tpu_custom_call.1} parent=5 // pred_check_branch
        %304 = sbr.rel (%p302) target = $region52
      $region51: #{tpu_custom_call.1} parent=5 // pred_region
        %s305 = ssub.s32 %s15, 2
        // Predicated region
        $region53: #{tpu_custom_call.1} parent=51 // pred_check
          %p306 = pneg %p103
        $region54: #{tpu_custom_call.1} parent=51 // pred_check_branch
          %308 = sbr.rel (%p306) target = $region56
        $region55: #{tpu_custom_call.1} parent=51 // pred_region
          %s309 = sand.u32 %s88, 1
          %s310 = scalar_lea.sflag [#allocation6], %s309
          %s311 = sand.u32 %s88, 1
          %s312 = smul.addr %s311, 8
          %s313 = scalar_lea.vmem [#allocation9], %s312
          %315 = dma.done %s310, 128
        $region56: #{tpu_custom_call.1} parent=51 // pred_fallthru
          _
      $region52: #{tpu_custom_call.1} parent=5 // pred_fallthru
        _
    $region6: #{tpu_custom_call.1} parent=1 // loop_footer
      %s19 = sadd.s32 1, %s15
    $region7: #{tpu_custom_call.1} parent=1 // loop_footer_branch
      %14 = sbr.rel target = $region3
    $region8: #{tpu_custom_call.1} parent=1 // loop_exit
      _
    %316 = vsyncpa [#allocation5], 1
    %s317 = scalar_lea.sflag [#allocation5], 1
    %318 = vsyncpa %s317, 1
    %319 = vsyncpa [#allocation8], 1
    %320 = vsyncpa [#allocation6], 1
    %s321 = scalar_lea.sflag [#allocation6], 1
    %322 = vsyncpa %s321, 1

</llo_original>
